<compile_context>
chip_gen: v5e
topology: v5e:2x2
jax: 0.10.0
libtpu: 0.0.40
codegen_flags: <defaults>
</compile_context>

<pallas_src>
import functools

import jax
import jax.numpy as jnp
from jax.experimental import pallas as pl
from jax.experimental.pallas import tpu as pltpu


# ---------------------------------------------------------------------------
# Kernel
# ---------------------------------------------------------------------------
def atom_encoder_kernel(x_ref, wk_ref, o_ref, *, num_cat, num_scalar, offsets,
                        vocab_total):
    """Fused embedding-sum + Linear as a single MXU matmul per node tile.

    x_ref : (TN, C+S) f32  raw node features (cat ids as floats, then scalars)
    wk_ref: (V+S, D)  f32  stacked [emb tables (bias folded into table 0); lin_w]
    o_ref : (TN, D)   f32
    """
    x = x_ref[...]
    tn = x.shape[0]
    ks = wk_ref.shape[0]                                    # V + S

    # Lane coordinates once per tile, cast to f32 so the categorical id
    # columns never need an int cast (ids are integer-valued floats; the
    # compare is exact for these vocab sizes).
    lane = jax.lax.broadcasted_iota(jnp.int32, (tn, ks), 1).astype(jnp.float32)

    # Multi-hot over the stacked vocab: C compares OR'd, one cast at the end.
    # (For real configs with V > 128, restrict each feature's compare to the
    #  128-lane group containing its vocab range; V+S = 19 here, so skip.)
    hot = None
    for ci in range(num_cat):
        match = lane == (x[:, ci:ci + 1] + float(offsets[ci]))
        hot = match if hot is None else (hot | match)
    act = hot.astype(jnp.float32)

    # Place scalar features into lanes V .. V+S-1 of the same activation so
    # embeddings + Linear collapse into ONE matmul (no separate dot + add).
    for j in range(num_scalar):
        act = jnp.where(lane == float(vocab_total + j),
                        x[:, num_cat + j:num_cat + j + 1], act)

    o_ref[...] = jnp.dot(act, wk_ref[...],
                         preferred_element_type=jnp.float32).astype(o_ref.dtype)


# ---------------------------------------------------------------------------
# One-time parameter prep (hoist out of the hot path; cache next to params)
# ---------------------------------------------------------------------------
def prepare_atom_encoder_params(emb_tables, lin_w=None, lin_b=None):
    """Stack all embedding tables (+ transposed Linear weight) into one
    (V+S, D) operand and fold the Linear bias into table 0."""
    num_cat = len(emb_tables)
    if num_cat == 0:
        # TODO(synk): support the no-categorical-features config (bias would
        # need its own always-on lane instead of the table-0 fold).
        raise NotImplementedError("at least one categorical feature expected")
    vocab = [int(t.shape[0]) for t in emb_tables]
    offsets = tuple(sum(vocab[:i]) for i in range(num_cat))
    vocab_total = sum(vocab)

    parts = [t.astype(jnp.float32) for t in emb_tables]
    if lin_w is not None and int(lin_w.shape[0]) > 0:
        num_scalar = int(lin_w.shape[0])
        # Fold Linear bias into table 0: every node selects exactly one row of
        # table 0 (valid ids assumed, as torch nn.Embedding also requires).
        parts[0] = parts[0] + lin_b.astype(jnp.float32)[None, :]
        parts.append(lin_w.astype(jnp.float32))
    else:
        num_scalar = 0

    wk = jnp.concatenate(parts, axis=0)                     # (V+S, D)
    return {
        "wk": wk,
        "offsets": offsets,
        "num_cat": num_cat,
        "num_scalar": num_scalar,
        "vocab_total": vocab_total,
    }


def _tensorcores_per_device():
    """Best-effort TensorCore count behind one Pallas 'parallel' grid.

    2 on megacore chips (v4 / v5p) and v7x, 1 on v5e / v6e.  Unknown kinds
    fall back to 1 (never wrong — just one fewer parallel split)."""
    try:
        kind = jax.devices()[0].device_kind.lower()
    except Exception:
        return 1
    if "lite" in kind or "v5e" in kind or "v6" in kind:
        return 1
    if "v4" in kind or "v5p" in kind or "7" in kind:
        return 2
    return 1


# ---------------------------------------------------------------------------
# Forward
# ---------------------------------------------------------------------------
def atom_encoder_forward(x, params, *, tile_n=2048):
    """AtomEncoder forward.

    x      : [N, C+S] (categorical ids as floats, then scalar features)
    params : output of prepare_atom_encoder_params()
    returns: [N, D] f32
    """
    wk = params["wk"]
    num_cat = params["num_cat"]
    num_scalar = params["num_scalar"]
    offsets = params["offsets"]
    vocab_total = params["vocab_total"]

    N, F = x.shape
    KS, D = wk.shape
    assert F == num_cat + num_scalar
    xf = x.astype(jnp.float32)

    # --- tile choice ---------------------------------------------------------
    # Big tiles amortize the ~0.35 us/grid-step overhead.  Only split into
    # multiple steps for small/medium N when the chip actually has >1
    # TensorCore behind the 'parallel' axis (v7x / megacore); on v5e/v6e a
    # single full-size tile is strictly better.
    cores = _tensorcores_per_device()
    tn = min(int(tile_n), N)
    if cores > 1:
        tn = min(tn, max(1, pl.cdiv(N, cores)))
    if tn < N:
        tn = min(((tn + 7) // 8) * 8, N)      # sublane multiple when tiling
    grid = (pl.cdiv(N, tn),)

    kernel = functools.partial(
        atom_encoder_kernel, num_cat=num_cat, num_scalar=num_scalar,
        offsets=offsets, vocab_total=vocab_total)

    # Ragged N: no wrapper pad / slice — Pallas pad-reads the partial last
    # block and clips its out-of-bounds writes; rows are independent, so
    # garbage in padded rows never reaches valid output.
    return pl.pallas_call(
        kernel,
        out_shape=jax.ShapeDtypeStruct((N, D), jnp.float32),
        grid_spec=pltpu.PrefetchScalarGridSpec(
            num_scalar_prefetch=0,
            grid=grid,
            in_specs=[
                pl.BlockSpec((tn, F), lambda i: (i, 0)),
                pl.BlockSpec((KS, D), lambda i: (0, 0)),   # grid-invariant
            ],
            out_specs=pl.BlockSpec((tn, D), lambda i: (i, 0)),
        ),
        compiler_params=pltpu.CompilerParams(
            dimension_semantics=("parallel",),
            # Footprint: x + out blocks, lane-padded & double-buffered:
            # ~4 * tn * 128 * 4 B  (~4 MiB at tn=2048, ~8 MiB at tn=4096) —
            # 32 MiB is safe on v5e..v7x (v7x physical VMEM is 64 MiB/TC).
            vmem_limit_bytes=32 * 1024 * 1024,
        ),
    )(xf, wk)


# ---------------------------------------------------------------------------
# Pure-JAX reference (gather-based, mirrors the torch module)
# ---------------------------------------------------------------------------
def reference_forward(x, emb_tables, lin_w, lin_b):
    num_cat = len(emb_tables)
    out = x[:, num_cat:] @ lin_w + lin_b[None, :]
    for i, tab in enumerate(emb_tables):
        out = out + tab[x[:, i].astype(jnp.int32)]
    return out


if __name__ == "__main__":
    key = jax.random.PRNGKey(0)

    # Module config: emb_dim=32, feature_dims = ([5, 7, 3], 4)
    emb_dim = 32
    cat_dims = [5, 7, 3]
    num_scalar = 4

    keys = jax.random.split(key, len(cat_dims) + 3)
    emb_tables = []
    for i, dim in enumerate(cat_dims):
        bound = (6.0 / (dim + emb_dim)) ** 0.5          # xavier-uniform
        emb_tables.append(
            jax.random.uniform(keys[i], (dim, emb_dim), jnp.float32, -bound, bound))
    lb = 1.0 / (num_scalar ** 0.5)
    lin_w = jax.random.uniform(keys[-3], (num_scalar, emb_dim), jnp.float32, -lb, lb)
    lin_b = jax.random.uniform(keys[-2], (emb_dim,), jnp.float32, -lb, lb)

    # One-time parameter prep, hoisted out of the forward (review item).
    params = prepare_atom_encoder_params(emb_tables, lin_w, lin_b)

    # Two sizes: tiny and ragged-larger (exercises the partial last block).
    for N in (16, 1000):
        kc, ksc = jax.random.split(jax.random.fold_in(keys[-1], N))
        cat_cols = jnp.stack(
            [jax.random.randint(jax.random.fold_in(kc, i), (N,), 0, d).astype(jnp.float32)
             for i, d in enumerate(cat_dims)], axis=1)                  # [N, 3]
        sc_cols = jax.random.normal(ksc, (N, num_scalar), jnp.float32)  # [N, 4]
        x = jnp.concatenate([cat_cols, sc_cols], axis=1)                # [N, 7]

        out = jax.block_until_ready(atom_encoder_forward(x, params))
        ref = reference_forward(x, emb_tables, lin_w, lin_b)
        assert out.shape == (N, emb_dim)
        err = float(jnp.max(jnp.abs(out - ref)))
        assert jnp.allclose(out, ref, atol=1e-5, rtol=1e-5), f"N={N} max_abs_err={err}"

    print("KERNEL_OK")
</pallas_src>

<mosaic_0001>
module attributes {stable_mosaic.version = 11 : i64} {
  func.func @atom_encoder_kernel(%arg0: i32, %arg1: memref<16x7xf32, #tpu.memory_space<vmem>>, %arg2: memref<19x32xf32, #tpu.memory_space<vmem>>, %arg3: memref<16x32xf32, #tpu.memory_space<vmem>>) attributes {dimension_semantics = [#tpu.dimension_semantics<parallel>], iteration_bounds = array<i64: 1>, scalar_prefetch = 0 : i64, scratch_operands = 0 : i64, tpu.core_type = #tpu.core_type<tc>, window_params = [{transform_indices = @transform_0, window_bounds = array<i64: 16, 7>}, {pipeline_mode = #tpu.pipeline_mode<synchronous>, transform_indices = @transform_1, window_bounds = array<i64: 19, 32>}, {transform_indices = @transform_2, window_bounds = array<i64: 16, 32>}]} {
    %c0 = arith.constant 0 : index
    %c0_0 = arith.constant 0 : index
    %0 = vector.load %arg1[%c0, %c0_0] : memref<16x7xf32, #tpu.memory_space<vmem>>, vector<16x7xf32>
    %1 = tpu.iota {dimensions = array<i32: 1>} : vector<16x19xi32>
    %2 = arith.sitofp %1 : vector<16x19xi32> to vector<16x19xf32>
    %3 = vector.extract_strided_slice %0 {offsets = [0, 0], sizes = [16, 1], strides = [1, 1]} : vector<16x7xf32> to vector<16x1xf32>
    %cst = arith.constant 0.000000e+00 : f32
    %4 = vector.broadcast %cst : f32 to vector<16x1xf32>
    %5 = arith.addf %3, %4 : vector<16x1xf32>
    %6 = vector.broadcast %5 : vector<16x1xf32> to vector<16x19xf32>
    %7 = arith.cmpf oeq, %2, %6 : vector<16x19xf32>
    %8 = vector.extract_strided_slice %0 {offsets = [0, 1], sizes = [16, 1], strides = [1, 1]} : vector<16x7xf32> to vector<16x1xf32>
    %cst_1 = arith.constant 5.000000e+00 : f32
    %9 = vector.broadcast %cst_1 : f32 to vector<16x1xf32>
    %10 = arith.addf %8, %9 : vector<16x1xf32>
    %11 = vector.broadcast %10 : vector<16x1xf32> to vector<16x19xf32>
    %12 = arith.cmpf oeq, %2, %11 : vector<16x19xf32>
    %13 = arith.ori %7, %12 : vector<16x19xi1>
    %14 = vector.extract_strided_slice %0 {offsets = [0, 2], sizes = [16, 1], strides = [1, 1]} : vector<16x7xf32> to vector<16x1xf32>
    %cst_2 = arith.constant 1.200000e+01 : f32
    %15 = vector.broadcast %cst_2 : f32 to vector<16x1xf32>
    %16 = arith.addf %14, %15 : vector<16x1xf32>
    %17 = vector.broadcast %16 : vector<16x1xf32> to vector<16x19xf32>
    %18 = arith.cmpf oeq, %2, %17 : vector<16x19xf32>
    %19 = arith.ori %13, %18 : vector<16x19xi1>
    %20 = arith.extui %19 : vector<16x19xi1> to vector<16x19xi32>
    %21 = arith.sitofp %20 : vector<16x19xi32> to vector<16x19xf32>
    %cst_3 = arith.constant 1.500000e+01 : f32
    %22 = vector.broadcast %cst_3 : f32 to vector<16x19xf32>
    %23 = arith.cmpf oeq, %2, %22 : vector<16x19xf32>
    %24 = vector.extract_strided_slice %0 {offsets = [0, 3], sizes = [16, 1], strides = [1, 1]} : vector<16x7xf32> to vector<16x1xf32>
    %25 = vector.shape_cast %24 : vector<16x1xf32> to vector<16x1xf32>
    %26 = vector.broadcast %25 : vector<16x1xf32> to vector<16x19xf32>
    %27 = arith.select %23, %26, %21 : vector<16x19xi1>, vector<16x19xf32>
    %cst_4 = arith.constant 1.600000e+01 : f32
    %28 = vector.broadcast %cst_4 : f32 to vector<16x19xf32>
    %29 = arith.cmpf oeq, %2, %28 : vector<16x19xf32>
    %30 = vector.extract_strided_slice %0 {offsets = [0, 4], sizes = [16, 1], strides = [1, 1]} : vector<16x7xf32> to vector<16x1xf32>
    %31 = vector.shape_cast %30 : vector<16x1xf32> to vector<16x1xf32>
    %32 = vector.broadcast %31 : vector<16x1xf32> to vector<16x19xf32>
    %33 = arith.select %29, %32, %27 : vector<16x19xi1>, vector<16x19xf32>
    %cst_5 = arith.constant 1.700000e+01 : f32
    %34 = vector.broadcast %cst_5 : f32 to vector<16x19xf32>
    %35 = arith.cmpf oeq, %2, %34 : vector<16x19xf32>
    %36 = vector.extract_strided_slice %0 {offsets = [0, 5], sizes = [16, 1], strides = [1, 1]} : vector<16x7xf32> to vector<16x1xf32>
    %37 = vector.shape_cast %36 : vector<16x1xf32> to vector<16x1xf32>
    %38 = vector.broadcast %37 : vector<16x1xf32> to vector<16x19xf32>
    %39 = arith.select %35, %38, %33 : vector<16x19xi1>, vector<16x19xf32>
    %cst_6 = arith.constant 1.800000e+01 : f32
    %40 = vector.broadcast %cst_6 : f32 to vector<16x19xf32>
    %41 = arith.cmpf oeq, %2, %40 : vector<16x19xf32>
    %42 = vector.extract_strided_slice %0 {offsets = [0, 6], sizes = [16, 1], strides = [1, 1]} : vector<16x7xf32> to vector<16x1xf32>
    %43 = vector.shape_cast %42 : vector<16x1xf32> to vector<16x1xf32>
    %44 = vector.broadcast %43 : vector<16x1xf32> to vector<16x19xf32>
    %45 = arith.select %41, %44, %39 : vector<16x19xi1>, vector<16x19xf32>
    %c0_7 = arith.constant 0 : index
    %c0_8 = arith.constant 0 : index
    %46 = vector.load %arg2[%c0_7, %c0_8] : memref<19x32xf32, #tpu.memory_space<vmem>>, vector<19x32xf32>
    %cst_9 = arith.constant dense<0.000000e+00> : vector<16x32xf32>
    %47 = tpu.matmul %45, %46, %cst_9 {dimension_numbers = #tpu.dot_dimension_numbers<[1], [0], [0], [1], [0, 0, 1, 1], [], []>} : vector<16x19xf32>, vector<19x32xf32>, vector<16x32xf32> -> vector<16x32xf32>
    %c0_10 = arith.constant 0 : index
    %c0_11 = arith.constant 0 : index
    %48 = vector.load %arg3[%c0_10, %c0_11] : memref<16x32xf32, #tpu.memory_space<vmem>>, vector<16x32xf32>
    tpu.vector_store %arg3[%c0_10, %c0_11], %47 {strides = array<i32>} : memref<16x32xf32, #tpu.memory_space<vmem>>, vector<16x32xf32>,
    return
  }
  func.func @transform_0(%arg0: i32) -> (i32, i32) {
    %c0_i32 = arith.constant 0 : i32
    %c0_i32_0 = arith.constant 0 : i32
    return %arg0, %c0_i32 : i32, i32
  }
  func.func @transform_1(%arg0: i32) -> (i32, i32) {
    %c0_i32 = arith.constant 0 : i32
    %c0_i32_0 = arith.constant 0 : i32
    %c0_i32_1 = arith.constant 0 : i32
    return %c0_i32, %c0_i32_0 : i32, i32
  }
  func.func @transform_2(%arg0: i32) -> (i32, i32) {
    %c0_i32 = arith.constant 0 : i32
    %c0_i32_0 = arith.constant 0 : i32
    return %arg0, %c0_i32 : i32, i32
  }
}

</mosaic_0001>

<llo_original>
// kernel: tpu_custom_call.1
$region0: #{tpu_custom_call.1}
  #allocation0 [shape = 'u32[]', space=smem, size = 0x4, offset = 0x4, fixed_abs, tag = 'smem constant byte address 0x4 - core index']
  #allocation1 [shape = 'u32[72,128]{1,0:T(1,128)}', space=vmem, size = 0x9000, scoped, tag = 'internal scratch']
  %s0 = inlined_call_operand.vmem [shape: f32[16,7], index: 0, kind: input, shape index: {}]
  %s1 = inlined_call_operand.vmem [shape: f32[19,32], index: 1, kind: input, shape index: {}]
  %s2 = inlined_call_operand.hbm [shape: f32[16,32], index: 2, kind: output, shape index: {}]
  %s3 = sld [smem:[#allocation0]]
  $region18: #{tpu_custom_call.1} parent=0
    _
  %s5 = ssub.s32 1, %s3
  %s6 = scalar_select 0, %s5, %s3
  $region1: #{tpu_custom_call.1} parent=0
    #allocation2 [shape = 'u8[8192]{0}', space=vmem, size = 0x2000, scoped, tag = 'output window, operand 0, single buffered']
    #allocation3 [shape = 's32[1]{0}', space=sflag, size = 0x4, scoped, tag = 'scoped memory for tpu_custom_call.1']
    %7 = vsyncpa [#allocation3], 0
    // Predicated region
    $region2: #{tpu_custom_call.1} parent=1 // pred_check
      _
    $region3: #{tpu_custom_call.1} parent=1 // pred_check_branch
      %9 = sbr.rel (0) target = $region5
    $region4: #{tpu_custom_call.1} parent=1 // pred_region
      _
    $region5: #{tpu_custom_call.1} parent=1 // pred_fallthru
      _
    // Predicated region
    $region6: #{tpu_custom_call.1} parent=1 // pred_check
      _
    $region7: #{tpu_custom_call.1} parent=1 // pred_check_branch
      %11 = sbr.rel (0) target = $region9
    $region8: #{tpu_custom_call.1} parent=1 // pred_region
      _
    $region9: #{tpu_custom_call.1} parent=1 // pred_fallthru
      _
    %v12 = vld [vmem:[%s0] sm:$0xff]
    %v13 = vld [vmem:[%s0 + $0x8] sm:$0xff]
    %v14 = vlaneseq
    %v15 = vand.u32 %v14, 127
    %v16 = vcvt.s32.f32 %v15
    %v17 = vadd.f32 %v12, 0.0
    %v18 = vadd.f32 %v13, 0.0
    %20 = vset.pattern.permute.xlu0 0
    %21 = vperm.xlu0 %20, %v17
    %v22 = vpop.permute.xlu0 %21
    %25 = vset.pattern.permute.xlu0 0
    %26 = vperm.xlu0 %25, %v18
    %v27 = vpop.permute.xlu0 %26
    %vm29 = vcmp.eq.f32.partialorder %v16, %v22
    %vm30 = vcmp.eq.f32.partialorder %v16, %v27
    %v31 = vadd.f32 %v12, 5.0
    %v32 = vadd.f32 %v13, 5.0
    %34 = vset.pattern.permute.xlu0 1
    %35 = vperm.xlu0 %34, %v31
    %v36 = vpop.permute.xlu0 %35
    %39 = vset.pattern.permute.xlu0 1
    %40 = vperm.xlu0 %39, %v32
    %v41 = vpop.permute.xlu0 %40
    %vm43 = vcmp.eq.f32.partialorder %v16, %v36
    %vm44 = vcmp.eq.f32.partialorder %v16, %v41
    %vm45 = vmor %vm29, %vm43
    %vm46 = vmor %vm30, %vm44
    %v47 = vadd.f32 %v12, 12.0
    %v48 = vadd.f32 %v13, 12.0
    %50 = vset.pattern.permute.xlu0 2
    %51 = vperm.xlu0 %50, %v47
    %v52 = vpop.permute.xlu0 %51
    %55 = vset.pattern.permute.xlu0 2
    %56 = vperm.xlu0 %55, %v48
    %v57 = vpop.permute.xlu0 %56
    %vm59 = vcmp.eq.f32.partialorder %v16, %v52
    %vm60 = vcmp.eq.f32.partialorder %v16, %v57
    %vm61 = vmor %vm45, %vm59
    %vm62 = vmor %vm46, %vm60
    %v63 = vsel %vm61, 1, 0
    %v64 = vsel %vm62, 1, 0
    %v65 = vcvt.s32.f32 %v63
    %v66 = vcvt.s32.f32 %v64
    %vm67 = vcmp.eq.f32.partialorder %v16, 15.0
    %69 = vset.pattern.permute.xlu0 3
    %70 = vperm.xlu0 %69, %v12
    %v71 = vpop.permute.xlu0 %70
    %74 = vset.pattern.permute.xlu0 3
    %75 = vperm.xlu0 %74, %v13
    %v76 = vpop.permute.xlu0 %75
    %v78 = vsel %vm67, %v71, %v65
    %v79 = vsel %vm67, %v76, %v66
    %vm80 = vcmp.eq.f32.partialorder %v16, 16.0
    %81 = vset.pattern.permute.xlu0 4
    %82 = vperm.xlu0 %81, %v12
    %v83 = vpop.permute.xlu0 %82
    %85 = vset.pattern.permute.xlu0 4
    %86 = vperm.xlu0 %85, %v13
    %v87 = vpop.permute.xlu0 %86
    %v89 = vsel %vm80, %v83, %v78
    %v90 = vsel %vm80, %v87, %v79
    %vm91 = vcmp.eq.f32.partialorder %v16, 17.0
    %92 = vset.pattern.permute.xlu0 5
    %93 = vperm.xlu0 %92, %v12
    %v94 = vpop.permute.xlu0 %93
    %96 = vset.pattern.permute.xlu0 5
    %97 = vperm.xlu0 %96, %v13
    %v98 = vpop.permute.xlu0 %97
    %v100 = vsel %vm91, %v94, %v89
    %v101 = vsel %vm91, %v98, %v90
    %vm102 = vcmp.eq.f32.partialorder %v16, 18.0
    %103 = vset.pattern.permute.xlu0 6
    %104 = vperm.xlu0 %103, %v12
    %v105 = vpop.permute.xlu0 %104
    %107 = vset.pattern.permute.xlu0 6
    %108 = vperm.xlu0 %107, %v13
    %v109 = vpop.permute.xlu0 %108
    %v111 = vsel %vm102, %v105, %v100
    %v112 = vsel %vm102, %v109, %v101
    %v113 = vld [vmem:[%s1] sm:$0xff]
    %v114 = vld [vmem:[%s1 + $0x8] sm:$0xff]
    %v115 = vld [vmem:[%s1 + $0x10] sm:$0x7]
    %vm116 = vcmask 154624
    %v118 = vsel %vm116, %v111, 0
    %v121 = vsel %vm116, %v112, 0
    %vm123 = vcmask 1042432
    %v125 = vsel %vm123, %v115, 0
    %127 = vmatpush.msra.mxu0 0.0
    %128 = vmatpush.msra.mxu0 0.0
    %129 = vmatpush.msra.mxu0 0.0
    %130 = vmatpush.msra.mxu0 0.0
    %131 = vmatpush.msra.mxu0 0.0
    %132 = vmatpush.msra.mxu0 0.0
    %133 = vmatpush.msra.mxu0 0.0
    %134 = vmatpush.msra.mxu0 0.0
    %135 = vmatpush.msra.mxu0 0.0
    %136 = vmatpush.msra.mxu0 0.0
    %137 = vmatpush.msra.mxu0 0.0
    %138 = vmatpush.msra.mxu0 0.0
    %139 = vmatpush.msra.mxu0 0.0
    %140 = vmatpush.msra.mxu0 %v125
    %141 = vmatpush.msra.mxu0 %v114
    %142 = vmatpush.msra.mxu0 %v113
    %143 = vmatmul.f32.gmra.mxu0 %v118
    %v144 = vpop.f32.mrf.mxu0
    %v145 = vadd.f32 0.0, %v144
    %146 = vmatmul.f32.gmra.mxu0 %v121
    %v147 = vpop.f32.mrf.mxu0
    %v148 = vadd.f32 0.0, %v147
    %149 = vdwg.mxu0
    %vm150 = vcmask 261120
    %151 = vst.msk [vmem:[#allocation2] sm:$0xff] %vm150, %v145
    %152 = vst.msk [vmem:[#allocation2 + $0x8] sm:$0xff] %vm150, %v148
    // Predicated region
    $region10: #{tpu_custom_call.1} parent=1 // pred_check
      _
    $region11: #{tpu_custom_call.1} parent=1 // pred_check_branch
      %154 = sbr.rel (0) target = $region13
    $region12: #{tpu_custom_call.1} parent=1 // pred_region
      %156 = vsyncadd [#allocation3], 0
      %s157 = sshll.u32 [#allocation2], 4
      %s158 = int_to_ptr.vmem [resolvable:$true] %s157
      %s159 = sshll.u32 %s2, 4
      %s160 = int_to_ptr.hbm [resolvable:$true] %s159
      %165 = dma.vmem_to_hbm [thread:$0]  %s158, 256, %s160, [#allocation3], 128, 128, 8
    $region13: #{tpu_custom_call.1} parent=1 // pred_fallthru
      _
    // Predicated region
    $region14: #{tpu_custom_call.1} parent=1 // pred_check
      _
    $region15: #{tpu_custom_call.1} parent=1 // pred_check_branch
      %167 = sbr.rel (0) target = $region17
    $region16: #{tpu_custom_call.1} parent=1 // pred_region
      %169 = dma.done [#allocation3], 256
    $region17: #{tpu_custom_call.1} parent=1 // pred_fallthru
      _
    %170 = vsyncpa [#allocation3], 1

</llo_original>
